<compile_context>
chip_gen: v5e
topology: v5e:2x2
jax: 0.10.0
libtpu: 0.0.40
codegen_flags: <defaults>
</compile_context>

<pallas_src>
import jax
import jax.numpy as jnp
from jax.experimental import pallas as pl
from jax.experimental.pallas import tpu as pltpu


def _round_up(x: int, m: int) -> int:
    return ((x + m - 1) // m) * m


def policy_net_kernel(x_ref, w1_ref, b1_ref, w2_ref, b2_ref,
                      logits_ref, logp_ref):
    """Fused fc1 -> ReLU -> fc2 -> log-softmax on one batch tile.

    x_ref     : (TB, S)  f32   batch tile
    w1_ref    : (S, H)   f32   VMEM-resident across all grid steps
    b1_ref    : (1, H)   f32
    w2_ref    : (H, A)   f32
    b2_ref    : (1, A)   f32
    logits_ref: (TB, A)  f32   (matches PyTorch forward)
    logp_ref  : (TB, A)  f32   (log-softmax, used by get_action)
    """
    x = x_ref[...]

    # fc1: (TB, S) @ (S, H) + (1, H) -> ReLU   (bias/ReLU in f32 on the VPU)
    h = jnp.dot(x, w1_ref[...], preferred_element_type=jnp.float32) + b1_ref[...]
    h = jnp.maximum(h, 0.0)

    # fc2: (TB, H) @ (H, A) + (1, A) -> logits
    logits = jnp.dot(h, w2_ref[...], preferred_element_type=jnp.float32) + b2_ref[...]
    logits_ref[...] = logits

    # Fused log-softmax over the (unpadded) action dim.
    m = jnp.max(logits, axis=-1, keepdims=True)
    e = jnp.exp(logits - m)
    denom = jnp.sum(e, axis=-1, keepdims=True)
    logp_ref[...] = logits - m - jnp.log(denom)


def policy_net_forward(x, w1, b1, w2, b2, *, block_b: int = 2048):
    """Run the fused policy head.

    Returns (logits, log_probs), each of shape (B, A): the PyTorch forward's
    logits plus the log-softmax used by get_action.
    """
    B, S = x.shape
    S_w, H = w1.shape
    H_w, A = w2.shape
    assert S_w == S and H_w == H
    assert b1.shape == (1, H) and b2.shape == (1, A)

    # Batch tile must respect the 8-sublane rule.
    block_b = max(8, _round_up(block_b, 8))

    # --- Choose batch tile TB so that (a) TB is a multiple of 8, (b) there
    # are >= 2 grid steps whenever the padded batch allows it (v7x megacore),
    # and (c) TB <= block_b so per-step VMEM stays bounded at huge batches.
    B8 = _round_up(B, 8)
    if B8 <= 8:
        TB = B8
    elif B8 <= 2 * block_b:
        TB = _round_up(pl.cdiv(B8, 2), 8)   # >= 2 grid steps
    else:
        TB = block_b
    B_pad = _round_up(B, TB)
    n_blocks = B_pad // TB

    x_in = jnp.pad(x, ((0, B_pad - B), (0, 0))) if B_pad != B else x

    logits_pad, logp_pad = pl.pallas_call(
        policy_net_kernel,
        out_shape=(
            jax.ShapeDtypeStruct((B_pad, A), jnp.float32),
            jax.ShapeDtypeStruct((B_pad, A), jnp.float32),
        ),
        grid=(n_blocks,),
        in_specs=[
            pl.BlockSpec((TB, S), lambda i: (i, 0)),   # x: tiled over batch
            pl.BlockSpec((S, H), lambda i: (0, 0)),    # w1: pinned in VMEM
            pl.BlockSpec((1, H), lambda i: (0, 0)),    # b1: pinned
            pl.BlockSpec((H, A), lambda i: (0, 0)),    # w2: pinned (unpadded)
            pl.BlockSpec((1, A), lambda i: (0, 0)),    # b2: pinned (unpadded)
        ],
        out_specs=(
            pl.BlockSpec((TB, A), lambda i: (i, 0)),
            pl.BlockSpec((TB, A), lambda i: (i, 0)),
        ),
        compiler_params=pltpu.CompilerParams(
            dimension_semantics=("parallel",),
        ),
    )(x_in, w1, b1, w2, b2)

    if B_pad != B:
        return logits_pad[:B], logp_pad[:B]
    return logits_pad, logp_pad


def init_policy_net_params(key, state_dim, action_dim, hidden_dim=128):
    """Init mirroring nn.Linear's default U(-1/sqrt(fan_in), 1/sqrt(fan_in)).
    Weights are stored transposed vs. PyTorch (out_features last) so the
    kernel computes x @ w directly."""
    k1, k2, k3, k4 = jax.random.split(key, 4)
    bound1 = 1.0 / jnp.sqrt(jnp.float32(state_dim))
    bound2 = 1.0 / jnp.sqrt(jnp.float32(hidden_dim))
    w1 = jax.random.uniform(k1, (state_dim, hidden_dim), jnp.float32, -bound1, bound1)
    b1 = jax.random.uniform(k2, (1, hidden_dim), jnp.float32, -bound1, bound1)
    w2 = jax.random.uniform(k3, (hidden_dim, action_dim), jnp.float32, -bound2, bound2)
    b2 = jax.random.uniform(k4, (1, action_dim), jnp.float32, -bound2, bound2)
    return w1, b1, w2, b2


def _reference(x, w1, b1, w2, b2):
    ref_logits = jnp.maximum(x @ w1 + b1, 0.0) @ w2 + b2
    return ref_logits, jax.nn.log_softmax(ref_logits, axis=-1)


if __name__ == "__main__":
    # Small shapes consistent with the module's forward: (batch, state_dim).
    state_dim = 16
    action_dim = 4
    hidden_dim = 128

    key = jax.random.PRNGKey(0)
    kx, kx2, kp = jax.random.split(key, 3)
    w1, b1, w2, b2 = init_policy_net_params(kp, state_dim, action_dim, hidden_dim)

    # Case 1: tiny batch (single grid step).
    x = jax.random.normal(kx, (8, state_dim), jnp.float32)
    logits, log_probs = policy_net_forward(x, w1, b1, w2, b2)
    jax.block_until_ready(logits)
    jax.block_until_ready(log_probs)
    ref_logits, ref_logp = _reference(x, w1, b1, w2, b2)
    assert logits.shape == (8, action_dim)
    assert log_probs.shape == (8, action_dim)
    assert jnp.allclose(logits, ref_logits, atol=1e-5, rtol=1e-5)
    assert jnp.allclose(log_probs, ref_logp, atol=1e-5, rtol=1e-5)

    # Case 2: non-multiple-of-8 batch -> exercises padding + 2 grid steps.
    x2 = jax.random.normal(kx2, (20, state_dim), jnp.float32)
    logits2, log_probs2 = policy_net_forward(x2, w1, b1, w2, b2)
    jax.block_until_ready(logits2)
    jax.block_until_ready(log_probs2)
    ref_logits2, ref_logp2 = _reference(x2, w1, b1, w2, b2)
    assert logits2.shape == (20, action_dim)
    assert log_probs2.shape == (20, action_dim)
    assert jnp.allclose(logits2, ref_logits2, atol=1e-5, rtol=1e-5)
    assert jnp.allclose(log_probs2, ref_logp2, atol=1e-5, rtol=1e-5)

    # TODO(synk): Categorical sampling (drawing the action index) from the
    # fused log_probs is left to host-side / plain-JAX code; only the
    # logits / log-softmax math is fused into the kernel.

    print("KERNEL_OK")
</pallas_src>

<mosaic_0001>
module attributes {stable_mosaic.version = 11 : i64} {
  func.func @policy_net_kernel(%arg0: i32, %arg1: memref<8x16xf32, #tpu.memory_space<vmem>>, %arg2: memref<16x128xf32, #tpu.memory_space<vmem>>, %arg3: memref<1x128xf32, #tpu.memory_space<vmem>>, %arg4: memref<128x4xf32, #tpu.memory_space<vmem>>, %arg5: memref<1x4xf32, #tpu.memory_space<vmem>>, %arg6: memref<8x4xf32, #tpu.memory_space<vmem>>, %arg7: memref<8x4xf32, #tpu.memory_space<vmem>>) attributes {dimension_semantics = [#tpu.dimension_semantics<parallel>], iteration_bounds = array<i64: 1>, scalar_prefetch = 0 : i64, scratch_operands = 0 : i64, tpu.core_type = #tpu.core_type<tc>, window_params = [{transform_indices = @transform_0, window_bounds = array<i64: 8, 16>}, {pipeline_mode = #tpu.pipeline_mode<synchronous>, transform_indices = @transform_1, window_bounds = array<i64: 16, 128>}, {pipeline_mode = #tpu.pipeline_mode<synchronous>, transform_indices = @transform_2, window_bounds = array<i64: 1, 128>}, {pipeline_mode = #tpu.pipeline_mode<synchronous>, transform_indices = @transform_3, window_bounds = array<i64: 128, 4>}, {pipeline_mode = #tpu.pipeline_mode<synchronous>, transform_indices = @transform_4, window_bounds = array<i64: 1, 4>}, {transform_indices = @transform_5, window_bounds = array<i64: 8, 4>}, {transform_indices = @transform_6, window_bounds = array<i64: 8, 4>}]} {
    %c0 = arith.constant 0 : index
    %c0_0 = arith.constant 0 : index
    %0 = vector.load %arg1[%c0, %c0_0] : memref<8x16xf32, #tpu.memory_space<vmem>>, vector<8x16xf32>
    %c0_1 = arith.constant 0 : index
    %c0_2 = arith.constant 0 : index
    %1 = vector.load %arg2[%c0_1, %c0_2] : memref<16x128xf32, #tpu.memory_space<vmem>>, vector<16x128xf32>
    %cst = arith.constant dense<0.000000e+00> : vector<8x128xf32>
    %2 = tpu.matmul %0, %1, %cst {dimension_numbers = #tpu.dot_dimension_numbers<[1], [0], [0], [1], [0, 0, 1, 1], [], []>} : vector<8x16xf32>, vector<16x128xf32>, vector<8x128xf32> -> vector<8x128xf32>
    %c0_3 = arith.constant 0 : index
    %c0_4 = arith.constant 0 : index
    %3 = vector.load %arg3[%c0_3, %c0_4] : memref<1x128xf32, #tpu.memory_space<vmem>>, vector<1x128xf32>
    %4 = vector.broadcast %3 : vector<1x128xf32> to vector<8x128xf32>
    %5 = arith.addf %2, %4 : vector<8x128xf32>
    %cst_5 = arith.constant 0.000000e+00 : f32
    %6 = vector.broadcast %cst_5 : f32 to vector<8x128xf32>
    %7 = arith.maximumf %5, %6 : vector<8x128xf32>
    %c0_6 = arith.constant 0 : index
    %c0_7 = arith.constant 0 : index
    %8 = vector.load %arg4[%c0_6, %c0_7] : memref<128x4xf32, #tpu.memory_space<vmem>>, vector<128x4xf32>
    %cst_8 = arith.constant dense<0.000000e+00> : vector<8x4xf32>
    %9 = tpu.matmul %7, %8, %cst_8 {dimension_numbers = #tpu.dot_dimension_numbers<[1], [0], [0], [1], [0, 0, 1, 1], [], []>} : vector<8x128xf32>, vector<128x4xf32>, vector<8x4xf32> -> vector<8x4xf32>
    %c0_9 = arith.constant 0 : index
    %c0_10 = arith.constant 0 : index
    %10 = vector.load %arg5[%c0_9, %c0_10] : memref<1x4xf32, #tpu.memory_space<vmem>>, vector<1x4xf32>
    %11 = vector.broadcast %10 : vector<1x4xf32> to vector<8x4xf32>
    %12 = arith.addf %9, %11 : vector<8x4xf32>
    %c0_11 = arith.constant 0 : index
    %c0_12 = arith.constant 0 : index
    %13 = vector.load %arg6[%c0_11, %c0_12] : memref<8x4xf32, #tpu.memory_space<vmem>>, vector<8x4xf32>
    tpu.vector_store %arg6[%c0_11, %c0_12], %12 {strides = array<i32>} : memref<8x4xf32, #tpu.memory_space<vmem>>, vector<8x4xf32>,
    %cst_13 = arith.constant dense<0xFF800000> : vector<8xf32>
    %14 = vector.multi_reduction <maximumf>, %12, %cst_13 [1] : vector<8x4xf32> to vector<8xf32>
    %15 = vector.shape_cast %14 : vector<8xf32> to vector<8x1xf32>
    %16 = vector.broadcast %15 : vector<8x1xf32> to vector<8x4xf32>
    %17 = arith.subf %12, %16 : vector<8x4xf32>
    %18 = math.exp %17 : vector<8x4xf32>
    %cst_14 = arith.constant dense<0.000000e+00> : vector<8xf32>
    %19 = vector.multi_reduction <add>, %18, %cst_14 [1] : vector<8x4xf32> to vector<8xf32>
    %20 = vector.shape_cast %19 : vector<8xf32> to vector<8x1xf32>
    %21 = vector.broadcast %15 : vector<8x1xf32> to vector<8x4xf32>
    %22 = arith.subf %12, %21 : vector<8x4xf32>
    %23 = math.log %20 : vector<8x1xf32>
    %24 = vector.broadcast %23 : vector<8x1xf32> to vector<8x4xf32>
    %25 = arith.subf %22, %24 : vector<8x4xf32>
    %c0_15 = arith.constant 0 : index
    %c0_16 = arith.constant 0 : index
    %26 = vector.load %arg7[%c0_15, %c0_16] : memref<8x4xf32, #tpu.memory_space<vmem>>, vector<8x4xf32>
    tpu.vector_store %arg7[%c0_15, %c0_16], %25 {strides = array<i32>} : memref<8x4xf32, #tpu.memory_space<vmem>>, vector<8x4xf32>,
    return
  }
  func.func @transform_0(%arg0: i32) -> (i32, i32) {
    %c0_i32 = arith.constant 0 : i32
    %c0_i32_0 = arith.constant 0 : i32
    return %arg0, %c0_i32 : i32, i32
  }
  func.func @transform_1(%arg0: i32) -> (i32, i32) {
    %c0_i32 = arith.constant 0 : i32
    %c0_i32_0 = arith.constant 0 : i32
    %c0_i32_1 = arith.constant 0 : i32
    return %c0_i32, %c0_i32_0 : i32, i32
  }
  func.func @transform_2(%arg0: i32) -> (i32, i32) {
    %c0_i32 = arith.constant 0 : i32
    %c0_i32_0 = arith.constant 0 : i32
    %c0_i32_1 = arith.constant 0 : i32
    return %c0_i32, %c0_i32_0 : i32, i32
  }
  func.func @transform_3(%arg0: i32) -> (i32, i32) {
    %c0_i32 = arith.constant 0 : i32
    %c0_i32_0 = arith.constant 0 : i32
    %c0_i32_1 = arith.constant 0 : i32
    return %c0_i32, %c0_i32_0 : i32, i32
  }
  func.func @transform_4(%arg0: i32) -> (i32, i32) {
    %c0_i32 = arith.constant 0 : i32
    %c0_i32_0 = arith.constant 0 : i32
    %c0_i32_1 = arith.constant 0 : i32
    return %c0_i32, %c0_i32_0 : i32, i32
  }
  func.func @transform_5(%arg0: i32) -> (i32, i32) {
    %c0_i32 = arith.constant 0 : i32
    %c0_i32_0 = arith.constant 0 : i32
    return %arg0, %c0_i32 : i32, i32
  }
  func.func @transform_6(%arg0: i32) -> (i32, i32) {
    %c0_i32 = arith.constant 0 : i32
    %c0_i32_0 = arith.constant 0 : i32
    return %arg0, %c0_i32 : i32, i32
  }
}

</mosaic_0001>

<llo_original>
// kernel: tpu_custom_call.1
$region0: #{tpu_custom_call.1}
  #allocation0 [shape = 'u32[]', space=smem, size = 0x4, offset = 0x4, fixed_abs, tag = 'smem constant byte address 0x4 - core index']
  #allocation1 [shape = 'u32[72,128]{1,0:T(1,128)}', space=vmem, size = 0x9000, scoped, tag = 'internal scratch']
  %s0 = inlined_call_operand.vmem [shape: f32[8,16], index: 0, kind: input, shape index: {}]
  %s1 = inlined_call_operand.vmem [shape: f32[16,128], index: 1, kind: input, shape index: {}]
  %s2 = inlined_call_operand.vmem [shape: f32[1,128], index: 2, kind: input, shape index: {}]
  %s3 = inlined_call_operand.vmem [shape: f32[128,4], index: 3, kind: input, shape index: {}]
  %s4 = inlined_call_operand.vmem [shape: f32[1,4], index: 4, kind: input, shape index: {}]
  %s5 = inlined_call_operand.vmem [shape: f32[8,4], index: 5, kind: output, shape index: {0}]
  %s6 = inlined_call_operand.vmem [shape: f32[8,4], index: 6, kind: output, shape index: {1}]
  %7 = xla_tuple %s5, %s6
  %s8 = sld [smem:[#allocation0]]
  $region38: #{tpu_custom_call.1} parent=0
    _
  %s10 = ssub.s32 1, %s8
  %s11 = scalar_select 0, %s10, %s8
  // Predicated region
  $region2: #{tpu_custom_call.1} parent=0 // pred_check
    _
  $region3: #{tpu_custom_call.1} parent=0 // pred_check_branch
    %13 = sbr.rel (0) target = $region5
  $region4: #{tpu_custom_call.1} parent=0 // pred_region
    _
  $region5: #{tpu_custom_call.1} parent=0 // pred_fallthru
    _
  // Predicated region
  $region6: #{tpu_custom_call.1} parent=0 // pred_check
    _
  $region7: #{tpu_custom_call.1} parent=0 // pred_check_branch
    %15 = sbr.rel (0) target = $region9
  $region8: #{tpu_custom_call.1} parent=0 // pred_region
    _
  $region9: #{tpu_custom_call.1} parent=0 // pred_fallthru
    _
  // Predicated region
  $region10: #{tpu_custom_call.1} parent=0 // pred_check
    _
  $region11: #{tpu_custom_call.1} parent=0 // pred_check_branch
    %17 = sbr.rel (0) target = $region13
  $region12: #{tpu_custom_call.1} parent=0 // pred_region
    _
  $region13: #{tpu_custom_call.1} parent=0 // pred_fallthru
    _
  // Predicated region
  $region14: #{tpu_custom_call.1} parent=0 // pred_check
    _
  $region15: #{tpu_custom_call.1} parent=0 // pred_check_branch
    %19 = sbr.rel (0) target = $region17
  $region16: #{tpu_custom_call.1} parent=0 // pred_region
    _
  $region17: #{tpu_custom_call.1} parent=0 // pred_fallthru
    _
  // Predicated region
  $region18: #{tpu_custom_call.1} parent=0 // pred_check
    _
  $region19: #{tpu_custom_call.1} parent=0 // pred_check_branch
    %21 = sbr.rel (0) target = $region21
  $region20: #{tpu_custom_call.1} parent=0 // pred_region
    _
  $region21: #{tpu_custom_call.1} parent=0 // pred_fallthru
    _
  %v22 = vld [vmem:[%s0] sm:$0xff]
  %v23 = vld [vmem:[%s1] sm:$0xff]
  %v24 = vld [vmem:[%s1 + $0x8] sm:$0xff]
  %v25 = vld [vmem:[%s2] sm:$0x1]
  %v27 = vperm.slane %v25, 0
  %vm29 = vcmask 130048
  %v31 = vsel %vm29, %v22, 0
  %33 = vmatpush.msra.mxu0 0.0
  %34 = vmatpush.msra.mxu0 0.0
  %35 = vmatpush.msra.mxu0 0.0
  %36 = vmatpush.msra.mxu0 0.0
  %37 = vmatpush.msra.mxu0 0.0
  %38 = vmatpush.msra.mxu0 0.0
  %39 = vmatpush.msra.mxu0 0.0
  %40 = vmatpush.msra.mxu0 0.0
  %41 = vmatpush.msra.mxu0 0.0
  %42 = vmatpush.msra.mxu0 0.0
  %43 = vmatpush.msra.mxu0 0.0
  %44 = vmatpush.msra.mxu0 0.0
  %45 = vmatpush.msra.mxu0 0.0
  %46 = vmatpush.msra.mxu0 0.0
  %47 = vmatpush.msra.mxu0 %v24
  %48 = vmatpush.msra.mxu0 %v23
  %49 = vmatmul.f32.gmra.mxu0 %v31
  %v50 = vpop.f32.mrf.mxu0
  %v51 = vadd.f32 %v27, %v50
  %52 = vdwg.mxu0
  %v53 = vmax.f32 %v51, 0.0
  %v54 = vld [vmem:[%s3] sm:$0xff]
  %v55 = vld [vmem:[%s3 + $0x8] sm:$0xff]
  %v56 = vld [vmem:[%s3 + $0x10] sm:$0xff]
  %v57 = vld [vmem:[%s3 + $0x18] sm:$0xff]
  %v58 = vld [vmem:[%s3 + $0x20] sm:$0xff]
  %v59 = vld [vmem:[%s3 + $0x28] sm:$0xff]
  %v60 = vld [vmem:[%s3 + $0x30] sm:$0xff]
  %v61 = vld [vmem:[%s3 + $0x38] sm:$0xff]
  %v62 = vld [vmem:[%s3 + $0x40] sm:$0xff]
  %v63 = vld [vmem:[%s3 + $0x48] sm:$0xff]
  %v64 = vld [vmem:[%s3 + $0x50] sm:$0xff]
  %v65 = vld [vmem:[%s3 + $0x58] sm:$0xff]
  %v66 = vld [vmem:[%s3 + $0x60] sm:$0xff]
  %v67 = vld [vmem:[%s3 + $0x68] sm:$0xff]
  %v68 = vld [vmem:[%s3 + $0x70] sm:$0xff]
  %v69 = vld [vmem:[%s3 + $0x78] sm:$0xff]
  %v70 = vld [vmem:[%s4] sm:$0x1]
  %v72 = vperm.slane %v70, 0
  %74 = vmatpush.msra.mxu0 %v69
  %75 = vmatpush.msra.mxu0 %v68
  %76 = vmatpush.msra.mxu0 %v67
  %77 = vmatpush.msra.mxu0 %v66
  %78 = vmatpush.msra.mxu0 %v65
  %79 = vmatpush.msra.mxu0 %v64
  %80 = vmatpush.msra.mxu0 %v63
  %81 = vmatpush.msra.mxu0 %v62
  %82 = vmatpush.msra.mxu0 %v61
  %83 = vmatpush.msra.mxu0 %v60
  %84 = vmatpush.msra.mxu0 %v59
  %85 = vmatpush.msra.mxu0 %v58
  %86 = vmatpush.msra.mxu0 %v57
  %87 = vmatpush.msra.mxu0 %v56
  %88 = vmatpush.msra.mxu0 %v55
  %89 = vmatpush.msra.mxu0 %v54
  %90 = vmatmul.f32.gmra.mxu0 %v53
  %v91 = vpop.f32.mrf.mxu0
  %v92 = vadd.f32 %v72, %v91
  %93 = vdwg.mxu0
  %vm94 = vcmask 31744
  %95 = vst.msk [vmem:[%s5] sm:$0xff] %vm94, %v92
  %v96 = vsel %vm94, %v92, -inf
  %97 = vmax.xlane.f32.xlu0 %v96
  %v98 = vpop.xlane.xlu0 %97
  %v99 = vsub.f32 %v92, %v98
  %v100 = vmul.f32 %v99, 1.442695
  %v101 = vpow.pop %v100
  %v102 = vsel %vm94, %v101, 0.0
  %103 = vadd.xlane.f32.xlu0 %v102
  %v104 = vpop.xlane.xlu0 %103
  %v105 = vlog2.pop %v104
  %v106 = vmul.f32 %v105, 0.6931472
  %v107 = vsub.f32 %v99, %v106
  %108 = vst.msk [vmem:[%s6] sm:$0xff] %vm94, %v107
  // Predicated region
  $region22: #{tpu_custom_call.1} parent=0 // pred_check
    _
  $region23: #{tpu_custom_call.1} parent=0 // pred_check_branch
    %110 = sbr.rel (0) target = $region25
  $region24: #{tpu_custom_call.1} parent=0 // pred_region
    _
  $region25: #{tpu_custom_call.1} parent=0 // pred_fallthru
    _
  // Predicated region
  $region26: #{tpu_custom_call.1} parent=0 // pred_check
    _
  $region27: #{tpu_custom_call.1} parent=0 // pred_check_branch
    %112 = sbr.rel (0) target = $region29
  $region28: #{tpu_custom_call.1} parent=0 // pred_region
    _
  $region29: #{tpu_custom_call.1} parent=0 // pred_fallthru
    _
  // Predicated region
  $region30: #{tpu_custom_call.1} parent=0 // pred_check
    _
  $region31: #{tpu_custom_call.1} parent=0 // pred_check_branch
    %114 = sbr.rel (0) target = $region33
  $region32: #{tpu_custom_call.1} parent=0 // pred_region
    _
  $region33: #{tpu_custom_call.1} parent=0 // pred_fallthru
    _
  // Predicated region
  $region34: #{tpu_custom_call.1} parent=0 // pred_check
    _
  $region35: #{tpu_custom_call.1} parent=0 // pred_check_branch
    %116 = sbr.rel (0) target = $region37
  $region36: #{tpu_custom_call.1} parent=0 // pred_region
    _
  $region37: #{tpu_custom_call.1} parent=0 // pred_fallthru
    _

</llo_original>
